<compile_context>
chip_gen: v7x
topology: tpu7x:2x2x1
jax: 0.10.0
libtpu: 0.0.40
codegen_flags: <defaults>
</compile_context>

<pallas_src>
import jax
import jax.numpy as jnp
from jax.experimental import pallas as pl
from jax.experimental.pallas import tpu as pltpu

K0, K1 = 3, 5          # MixConv kernel sizes
P0, P1 = 1, 2          # paddings
_LANE = 128


def _round_up(x, m):
    return (x + m - 1) // m * m


# --------------------------------------------------------------------------- kernel
def _fused_matmul_kernel(x_ref, w_ref, b_ref, o_ref):
    """One M tile: out = im2col_patches @ W_fused + bias_fused (single MXU matmul)."""
    acc = jnp.dot(x_ref[...], w_ref[...], preferred_element_type=jnp.float32)
    o_ref[...] = (acc + b_ref[...]).astype(o_ref.dtype)


# --------------------------------------------------------------------------- fold / lowering
def _fold_params(params, c0, cout, coutp, kp, eps, compute_dtype):
    """Fold depthwise weights + all biases + BatchNorm into one (Kp, CoutP) weight/bias."""
    f32 = jnp.float32
    w_pw = params["w_pw"].astype(f32)                                       # (Cin, Cout)
    scale = params["bn_gamma"].astype(f32) * jax.lax.rsqrt(
        params["bn_var"].astype(f32) + eps)
    w_eff = w_pw * scale[None, :]                                           # (Cin, Cout)

    b_dw = jnp.concatenate([params["b_dw0"], params["b_dw1"]]).astype(f32)  # (Cin,)
    bias = (scale * (params["b_pw"].astype(f32)
                     + jnp.dot(b_dw, w_pw, precision=jax.lax.Precision.HIGHEST)
                     - params["bn_mean"].astype(f32))
            + params["bn_beta"].astype(f32))                                # (Cout,)

    def fold(w_dw, w_eff_g, k):                                             # (k*k*Cg, Cout)
        cg = w_dw.shape[-1]
        wf = w_dw.astype(f32).reshape(k * k, cg, 1) * w_eff_g[None, :, :]
        return wf.reshape(k * k * cg, cout)

    w_full = jnp.concatenate([fold(params["w_dw0"], w_eff[:c0], K0),
                              fold(params["w_dw1"], w_eff[c0:], K1)], axis=0)
    w_full = jnp.pad(w_full, ((0, kp - w_full.shape[0]), (0, coutp - cout)))
    bias_p = jnp.pad(bias, (0, coutp - cout)).reshape(1, coutp)             # stays f32
    return w_full.astype(compute_dtype), bias_p


def _im2col_group(x_g, k, p, ho, wo, compute_dtype):
    """Lower one channel group's stride-2 depthwise taps: (N, Ho, Wo, k*k*Cg)."""
    xp = jnp.pad(x_g.astype(compute_dtype), ((0, 0), (p, p), (p, p), (0, 0)))
    taps = [xp[:, kh::2, kw::2, :][:, :ho, :wo, :]
            for kh in range(k) for kw in range(k)]          # tap-major, channel-minor
    return jnp.concatenate(taps, axis=-1)


def _vmem_plan(m, kp, coutp, in_bytes, out_bytes):
    """Per-generation VMEM budget and the largest MXU-shaped M tile that fits it."""
    try:                                        # 128 MiB on v5e/v6e, 64 MiB on v7x
        cap = int(getattr(pltpu.get_tpu_info(), "vmem_capacity_bytes",
                          128 * 1024 * 1024))
    except Exception:                           # interpret / CPU fallback
        cap = 128 * 1024 * 1024
    budget = cap // 2                           # what our blocks may use
    vmem_limit = int(min(cap * 3 // 4, cap - 8 * 1024 * 1024))

    def block_bytes(tm):                        # exact, lane-padded block footprints
        lhs = tm * kp * in_bytes * 2            # double-buffered patch tiles
        rhs = kp * coutp * in_bytes * 2         # resident fused weight (2 bufs default)
        bia = coutp * 4 * 2                     # resident fused bias
        out = tm * coutp * out_bytes * 2        # double-buffered output tiles
        return lhs + rhs + bia + out

    tm, cand = 8, 8
    m_cap = max(_round_up(m, 8), 8)
    while cand <= min(m_cap, 8192):
        if block_bytes(cand) <= budget:
            tm = cand
        cand *= 2
    # keep >=2 grid steps when tiles stay MXU-sized (feeds both v7x TensorCores)
    if _round_up(m, tm) // tm < 2 and tm >= 512:
        tm //= 2
    return tm, vmem_limit


# --------------------------------------------------------------------------- entry point
def mixconv_downsample(x_nchw, params, *, compute_dtype=jnp.float32, eps=1e-5):
    n, cin, h, w = x_nchw.shape
    c0 = params["w_dw0"].shape[-1]
    c1 = params["w_dw1"].shape[-1]
    cout = params["w_pw"].shape[-1]
    assert c0 + c1 == cin
    ho = (h + 2 * P0 - K0) // 2 + 1            # identical for both MixConv branches
    wo = (w + 2 * P0 - K0) // 2 + 1

    ktot = K0 * K0 * c0 + K1 * K1 * c1         # fused contraction depth
    kp = _round_up(ktot, _LANE)                # lane-dense K
    coutp = _round_up(cout, _LANE)             # lane-dense output channels (unmasked vst)
    f32_path = jnp.dtype(compute_dtype) == jnp.dtype(jnp.float32)
    out_dtype = jnp.float32 if f32_path else jnp.dtype(compute_dtype)

    # im2col lowering of both depthwise branches (trace-time, fused by XLA).
    x = jnp.transpose(x_nchw, (0, 2, 3, 1))                            # NCHW -> NHWC
    p0 = _im2col_group(x[..., :c0], K0, P0, ho, wo, compute_dtype)     # (N,Ho,Wo, 9*c0)
    p1 = _im2col_group(x[..., c0:], K1, P1, ho, wo, compute_dtype)     # (N,Ho,Wo,25*c1)
    patches = jnp.concatenate([p0, p1], axis=-1).reshape(n * ho * wo, ktot)

    m = n * ho * wo
    in_bytes = jnp.dtype(compute_dtype).itemsize
    out_bytes = jnp.dtype(out_dtype).itemsize
    tm, vmem_limit = _vmem_plan(m, kp, coutp, in_bytes, out_bytes)
    mpad = _round_up(m, tm)
    patches = jnp.pad(patches, ((0, mpad - m), (0, kp - ktot)))

    w_full, bias = _fold_params(params, c0, cout, coutp, kp, eps, compute_dtype)

    out = pl.pallas_call(
        _fused_matmul_kernel,
        out_shape=jax.ShapeDtypeStruct((mpad, coutp), out_dtype),
        grid=(mpad // tm,),
        in_specs=[
            pl.BlockSpec((tm, kp), lambda i: (i, 0)),       # patch tile (streamed)
            pl.BlockSpec((kp, coutp), lambda i: (0, 0)),    # fused weight (resident)
            pl.BlockSpec((1, coutp), lambda i: (0, 0)),     # fused bias (resident)
        ],
        out_specs=pl.BlockSpec((tm, coutp), lambda i: (i, 0)),
        compiler_params=pltpu.CompilerParams(
            dimension_semantics=("parallel",),
            vmem_limit_bytes=vmem_limit),
    )(patches, w_full, bias)

    y = out[:m, :cout].reshape(n, ho, wo, cout)             # drop M / lane padding
    return jnp.transpose(y, (0, 3, 1, 2))                   # NHWC -> NCHW


# --------------------------------------------------------------------------- pure-JAX reference
def reference(x_nchw, params, eps=1e-5):
    c0 = params["w_dw0"].shape[-1]
    x0, x1 = x_nchw[:, :c0], x_nchw[:, c0:]

    def dw(xg, w_hwc, b, p):
        cg = xg.shape[1]
        wt = jnp.transpose(w_hwc, (2, 0, 1))[:, None]               # (cg,1,k,k)
        y = jax.lax.conv_general_dilated(
            xg, wt, window_strides=(2, 2), padding=[(p, p), (p, p)],
            dimension_numbers=("NCHW", "OIHW", "NCHW"), feature_group_count=cg,
            precision=jax.lax.Precision.HIGHEST)
        return y + b.reshape(1, cg, 1, 1)

    feat = jnp.concatenate([dw(x0, params["w_dw0"], params["b_dw0"], P0),
                            dw(x1, params["w_dw1"], params["b_dw1"], P1)], axis=1)
    wpw = jnp.transpose(params["w_pw"], (1, 0))[:, :, None, None]   # (Cout,Cin,1,1)
    y = jax.lax.conv_general_dilated(feat, wpw, (1, 1), "VALID",
                                     dimension_numbers=("NCHW", "OIHW", "NCHW"),
                                     precision=jax.lax.Precision.HIGHEST)
    y = y + params["b_pw"].reshape(1, -1, 1, 1)
    inv = 1.0 / jnp.sqrt(params["bn_var"] + eps)
    return ((y - params["bn_mean"].reshape(1, -1, 1, 1))
            * (inv * params["bn_gamma"]).reshape(1, -1, 1, 1)
            + params["bn_beta"].reshape(1, -1, 1, 1))


# --------------------------------------------------------------------------- main
def _make_params(key, cin, cout):
    c0 = cin // 2 + cin % 2                  # MixConv split: remainder to group 0
    c1 = cin - c0
    ks = jax.random.split(key, 6)
    return dict(
        w_dw0=0.2 * jax.random.normal(ks[0], (K0, K0, c0), jnp.float32),
        b_dw0=0.1 * jax.random.normal(ks[1], (c0,), jnp.float32),
        w_dw1=0.2 * jax.random.normal(ks[2], (K1, K1, c1), jnp.float32),
        b_dw1=0.1 * jax.random.normal(ks[3], (c1,), jnp.float32),
        w_pw=0.2 * jax.random.normal(ks[4], (cin, cout), jnp.float32),
        b_pw=0.1 * jax.random.normal(ks[5], (cout,), jnp.float32),
        bn_gamma=1.0 + 0.1 * jnp.arange(cout, dtype=jnp.float32),
        bn_beta=0.05 * jnp.arange(cout, dtype=jnp.float32),
        bn_mean=0.02 * jnp.arange(cout, dtype=jnp.float32),
        bn_var=1.0 + 0.03 * jnp.arange(cout, dtype=jnp.float32),
    )


if __name__ == "__main__":
    key = jax.random.PRNGKey(0)
    kp_, kx, kp2, kx2 = jax.random.split(key, 4)

    # ---- main config: N=2, Cin=4, Cout=8, 16x16, f32 -------------------------------
    params = _make_params(kp_, 4, 8)
    x = jax.random.normal(kx, (2, 4, 16, 16), jnp.float32)
    y = jax.block_until_ready(mixconv_downsample(x, params))
    y_ref = jax.block_until_ready(reference(x, params))
    assert y.shape == y_ref.shape == (2, 8, 8, 8), (y.shape, y_ref.shape)
    assert jnp.allclose(y, y_ref, rtol=2e-3, atol=2e-3), float(jnp.max(jnp.abs(y - y_ref)))

    # ---- odd H, different channel split, f32 ---------------------------------------
    params2 = _make_params(kp2, 6, 10)
    x2 = jax.random.normal(kx2, (1, 6, 15, 16), jnp.float32)
    y2 = jax.block_until_ready(mixconv_downsample(x2, params2))
    y2_ref = jax.block_until_ready(reference(x2, params2))
    assert y2.shape == y2_ref.shape, (y2.shape, y2_ref.shape)
    assert jnp.allclose(y2, y2_ref, rtol=2e-3, atol=2e-3), float(jnp.max(jnp.abs(y2 - y2_ref)))

    # ---- bf16 compute path (MXU-native, f32 accumulation), loose check --------------
    y_bf = jax.block_until_ready(mixconv_downsample(x, params, compute_dtype=jnp.bfloat16))
    assert jnp.allclose(y_bf, y_ref, rtol=5e-2, atol=5e-2), float(jnp.max(jnp.abs(y_bf - y_ref)))

    print("KERNEL_OK")
</pallas_src>

<mosaic_0001>
module attributes {stable_mosaic.version = 11 : i64} {
  func.func @_fused_matmul_kernel(%arg0: i32, %arg1: memref<128x128xf32, #tpu.memory_space<vmem>>, %arg2: memref<128x128xf32, #tpu.memory_space<vmem>>, %arg3: memref<1x128xf32, #tpu.memory_space<vmem>>, %arg4: memref<128x128xf32, #tpu.memory_space<vmem>>) attributes {dimension_semantics = [#tpu.dimension_semantics<parallel>], iteration_bounds = array<i64: 1>, scalar_prefetch = 0 : i64, scratch_operands = 0 : i64, tpu.core_type = #tpu.core_type<tc>, window_params = [{transform_indices = @transform_0, window_bounds = array<i64: 128, 128>}, {pipeline_mode = #tpu.pipeline_mode<synchronous>, transform_indices = @transform_1, window_bounds = array<i64: 128, 128>}, {pipeline_mode = #tpu.pipeline_mode<synchronous>, transform_indices = @transform_2, window_bounds = array<i64: 1, 128>}, {transform_indices = @transform_3, window_bounds = array<i64: 128, 128>}]} {
    %c0 = arith.constant 0 : index
    %c0_0 = arith.constant 0 : index
    %0 = vector.load %arg1[%c0, %c0_0] : memref<128x128xf32, #tpu.memory_space<vmem>>, vector<128x128xf32>
    %c0_1 = arith.constant 0 : index
    %c0_2 = arith.constant 0 : index
    %1 = vector.load %arg2[%c0_1, %c0_2] : memref<128x128xf32, #tpu.memory_space<vmem>>, vector<128x128xf32>
    %cst = arith.constant dense<0.000000e+00> : vector<128x128xf32>
    %2 = tpu.matmul %0, %1, %cst {dimension_numbers = #tpu.dot_dimension_numbers<[1], [0], [0], [1], [0, 0, 1, 1], [], []>} : vector<128x128xf32>, vector<128x128xf32>, vector<128x128xf32> -> vector<128x128xf32>
    %c0_3 = arith.constant 0 : index
    %c0_4 = arith.constant 0 : index
    %3 = vector.load %arg3[%c0_3, %c0_4] : memref<1x128xf32, #tpu.memory_space<vmem>>, vector<1x128xf32>
    %4 = vector.broadcast %3 : vector<1x128xf32> to vector<128x128xf32>
    %5 = arith.addf %2, %4 : vector<128x128xf32>
    %c0_5 = arith.constant 0 : index
    %c0_6 = arith.constant 0 : index
    %6 = vector.load %arg4[%c0_5, %c0_6] : memref<128x128xf32, #tpu.memory_space<vmem>>, vector<128x128xf32>
    tpu.vector_store %arg4[%c0_5, %c0_6], %5 {strides = array<i32>} : memref<128x128xf32, #tpu.memory_space<vmem>>, vector<128x128xf32>,
    return
  }
  func.func @transform_0(%arg0: i32) -> (i32, i32) {
    %c0_i32 = arith.constant 0 : i32
    %c0_i32_0 = arith.constant 0 : i32
    return %arg0, %c0_i32 : i32, i32
  }
  func.func @transform_1(%arg0: i32) -> (i32, i32) {
    %c0_i32 = arith.constant 0 : i32
    %c0_i32_0 = arith.constant 0 : i32
    %c0_i32_1 = arith.constant 0 : i32
    return %c0_i32, %c0_i32_0 : i32, i32
  }
  func.func @transform_2(%arg0: i32) -> (i32, i32) {
    %c0_i32 = arith.constant 0 : i32
    %c0_i32_0 = arith.constant 0 : i32
    %c0_i32_1 = arith.constant 0 : i32
    return %c0_i32, %c0_i32_0 : i32, i32
  }
  func.func @transform_3(%arg0: i32) -> (i32, i32) {
    %c0_i32 = arith.constant 0 : i32
    %c0_i32_0 = arith.constant 0 : i32
    return %arg0, %c0_i32 : i32, i32
  }
}

</mosaic_0001>

<llo_original>
// kernel: tpu_custom_call.1
$region0: #{tpu_custom_call.1}
  #allocation0 [shape = 'u32[]', space=smem, size = 0x4, offset = 0x4, fixed_abs, tag = 'smem constant byte address 0x4 - core index']
  #allocation1 [shape = 'u32[144,128]{1,0:T(1,128)}', space=vmem, size = 0x12000, scoped, tag = 'internal scratch']
  %s0 = inlined_call_operand.hbm [shape: f32[128,128], index: 0, kind: input, shape index: {}]
  %s1 = inlined_call_operand.hbm [shape: f32[128,128], index: 1, kind: input, shape index: {}]
  %s2 = inlined_call_operand.hbm [shape: f32[1,128], index: 2, kind: input, shape index: {}]
  %s3 = inlined_call_operand.hbm [shape: f32[128,128], index: 3, kind: output, shape index: {}]
  %s4 = sld [smem:[#allocation0]]
  $region34: #{tpu_custom_call.1} parent=0
    _
  %s6 = ssub.s32 1, %s4
  %s7 = scalar_select 0, %s6, %s4
  $region1: #{tpu_custom_call.1} parent=0
    #allocation2 [shape = 'u8[65536]{0}', space=vmem, size = 0x10000, scoped, tag = 'input window, operand 0, single buffered']
    #allocation3 [shape = 's32[1]{0}', space=sflag, size = 0x4, scoped, tag = 'scoped memory for tpu_custom_call.1']
    #allocation4 [shape = 's32[1]{0}', space=sflag, size = 0x4, scoped, tag = 'scoped memory for tpu_custom_call.1']
    #allocation5 [shape = 'u8[65536]{0}', space=vmem, size = 0x10000, scoped, tag = 'input window, operand 1, single buffered']
    #allocation6 [shape = 's32[1]{0}', space=sflag, size = 0x4, scoped, tag = 'scoped memory for tpu_custom_call.1']
    #allocation7 [shape = 'u8[512]{0}', space=vmem, size = 0x400, scoped, tag = 'input window, operand 2, single buffered']
    #allocation8 [shape = 'u8[65536]{0}', space=vmem, size = 0x10000, scoped, tag = 'output window, operand 0, single buffered']
    %8 = vsyncpa [#allocation3], 0
    %9 = vsyncpa [#allocation6], 0
    %10 = vsyncpa [#allocation4], 0
    // Predicated region
    $region2: #{tpu_custom_call.1} parent=1 // pred_check
      _
    $region3: #{tpu_custom_call.1} parent=1 // pred_check_branch
      %12 = sbr.rel (0) target = $region5
    $region4: #{tpu_custom_call.1} parent=1 // pred_region
      %s14 = ssub.s32 2048, 2048
      %15 = vsyncadd [#allocation3], %s14
      %s16 = sshll.u32 [#allocation2], 4
      %s17 = int_to_ptr.vmem [resolvable:$true] %s16
      %22 = dma.hbm_to_vmem [thread:$0]  %s0, 2048, %s17, [#allocation3], 128, 128, 8
    $region5: #{tpu_custom_call.1} parent=1 // pred_fallthru
      _
    // Predicated region
    $region6: #{tpu_custom_call.1} parent=1 // pred_check
      _
    $region7: #{tpu_custom_call.1} parent=1 // pred_check_branch
      %24 = sbr.rel (0) target = $region9
    $region8: #{tpu_custom_call.1} parent=1 // pred_region
      %s26 = ssub.s32 2048, 2048
      %27 = vsyncadd [#allocation6], %s26
      %s28 = sshll.u32 [#allocation5], 4
      %s29 = int_to_ptr.vmem [resolvable:$true] %s28
      %34 = dma.hbm_to_vmem [thread:$0]  %s1, 2048, %s29, [#allocation6], 128, 128, 8
    $region9: #{tpu_custom_call.1} parent=1 // pred_fallthru
      _
    // Predicated region
    $region10: #{tpu_custom_call.1} parent=1 // pred_check
      _
    $region11: #{tpu_custom_call.1} parent=1 // pred_check_branch
      %36 = sbr.rel (0) target = $region13
    $region12: #{tpu_custom_call.1} parent=1 // pred_region
      %s38 = ssub.s32 16, 16
      %39 = vsyncadd [#allocation6], %s38
      %s41 = sshll.u32 [#allocation7], 4
      %s42 = int_to_ptr.vmem [resolvable:$true] %s41
      %44 = dma.hbm_to_vmem [thread:$0]  %s2, 16, %s42, [#allocation6]
    $region13: #{tpu_custom_call.1} parent=1 // pred_fallthru
      _
    // Predicated region
    $region14: #{tpu_custom_call.1} parent=1 // pred_check
      _
    $region15: #{tpu_custom_call.1} parent=1 // pred_check_branch
      %46 = sbr.rel (0) target = $region17
    $region16: #{tpu_custom_call.1} parent=1 // pred_region
      %47 = dma.done [#allocation3], 2048
    $region17: #{tpu_custom_call.1} parent=1 // pred_fallthru
      _
    // Predicated region
    $region18: #{tpu_custom_call.1} parent=1 // pred_check
      _
    $region19: #{tpu_custom_call.1} parent=1 // pred_check_branch
      %49 = sbr.rel (0) target = $region21
    $region20: #{tpu_custom_call.1} parent=1 // pred_region
      %50 = dma.done [#allocation6], 2048
    $region21: #{tpu_custom_call.1} parent=1 // pred_fallthru
      _
    // Predicated region
    $region22: #{tpu_custom_call.1} parent=1 // pred_check
      _
    $region23: #{tpu_custom_call.1} parent=1 // pred_check_branch
      %52 = sbr.rel (0) target = $region25
    $region24: #{tpu_custom_call.1} parent=1 // pred_region
      %53 = dma.done [#allocation6], 16
    $region25: #{tpu_custom_call.1} parent=1 // pred_fallthru
      _
    %v54 = vld [vmem:[#allocation2] sm:$0xff]
    %v55 = vld [vmem:[#allocation2 + $0x8] sm:$0xff]
    %v56 = vld [vmem:[#allocation2 + $0x10] sm:$0xff]
    %v57 = vld [vmem:[#allocation2 + $0x18] sm:$0xff]
    %v58 = vld [vmem:[#allocation2 + $0x20] sm:$0xff]
    %v59 = vld [vmem:[#allocation2 + $0x28] sm:$0xff]
    %v60 = vld [vmem:[#allocation2 + $0x30] sm:$0xff]
    %v61 = vld [vmem:[#allocation2 + $0x38] sm:$0xff]
    %v62 = vld [vmem:[#allocation2 + $0x40] sm:$0xff]
    %v63 = vld [vmem:[#allocation2 + $0x48] sm:$0xff]
    %v64 = vld [vmem:[#allocation2 + $0x50] sm:$0xff]
    %v65 = vld [vmem:[#allocation2 + $0x58] sm:$0xff]
    %v66 = vld [vmem:[#allocation2 + $0x60] sm:$0xff]
    %v67 = vld [vmem:[#allocation2 + $0x68] sm:$0xff]
    %v68 = vld [vmem:[#allocation2 + $0x70] sm:$0xff]
    %v69 = vld [vmem:[#allocation2 + $0x78] sm:$0xff]
    %v70 = vld [vmem:[#allocation5] sm:$0xff]
    %v71 = vld [vmem:[#allocation5 + $0x8] sm:$0xff]
    %v72 = vld [vmem:[#allocation5 + $0x10] sm:$0xff]
    %v73 = vld [vmem:[#allocation5 + $0x18] sm:$0xff]
    %v74 = vld [vmem:[#allocation5 + $0x20] sm:$0xff]
    %v75 = vld [vmem:[#allocation5 + $0x28] sm:$0xff]
    %v76 = vld [vmem:[#allocation5 + $0x30] sm:$0xff]
    %v77 = vld [vmem:[#allocation5 + $0x38] sm:$0xff]
    %v78 = vld [vmem:[#allocation5 + $0x40] sm:$0xff]
    %v79 = vld [vmem:[#allocation5 + $0x48] sm:$0xff]
    %v80 = vld [vmem:[#allocation5 + $0x50] sm:$0xff]
    %v81 = vld [vmem:[#allocation5 + $0x58] sm:$0xff]
    %v82 = vld [vmem:[#allocation5 + $0x60] sm:$0xff]
    %v83 = vld [vmem:[#allocation5 + $0x68] sm:$0xff]
    %v84 = vld [vmem:[#allocation5 + $0x70] sm:$0xff]
    %v85 = vld [vmem:[#allocation5 + $0x78] sm:$0xff]
    %v86 = vld [vmem:[#allocation7] sm:$0x1]
    %v88 = vlaneseq
    %v89 = vshrl.u32 %v88, 7
    %v90 = vsub.s32 0, %v89
    %v91 = vrot.slane %v86, %v90
    %93 = vmatprep.subr.mxu0 0.0
    %94 = vmatpush1.msra.mxu0 %v70
    %95 = vmatprep.subr.mxu0 0.0
    %96 = vmatpush1.msra.mxu0 %v71
    %97 = vmatprep.subr.mxu0 0.0
    %98 = vmatpush1.msra.mxu0 %v72
    %99 = vmatprep.subr.mxu0 0.0
    %100 = vmatpush1.msra.mxu0 %v73
    %101 = vmatprep.subr.mxu0 0.0
    %102 = vmatpush1.msra.mxu0 %v74
    %103 = vmatprep.subr.mxu0 0.0
    %104 = vmatpush1.msra.mxu0 %v75
    %105 = vmatprep.subr.mxu0 0.0
    %106 = vmatpush1.msra.mxu0 %v76
    %107 = vmatprep.subr.mxu0 0.0
    %108 = vmatpush1.msra.mxu0 %v77
    %109 = vmatprep.subr.mxu0 0.0
    %110 = vmatpush1.msra.mxu0 %v78
    %111 = vmatprep.subr.mxu0 0.0
    %112 = vmatpush1.msra.mxu0 %v79
    %113 = vmatprep.subr.mxu0 0.0
    %114 = vmatpush1.msra.mxu0 %v80
    %115 = vmatprep.subr.mxu0 0.0
    %116 = vmatpush1.msra.mxu0 %v81
    %117 = vmatprep.subr.mxu0 0.0
    %118 = vmatpush1.msra.mxu0 %v82
    %119 = vmatprep.subr.mxu0 0.0
    %120 = vmatpush1.msra.mxu0 %v83
    %121 = vmatprep.subr.mxu0 0.0
    %122 = vmatpush1.msra.mxu0 %v84
    %123 = vmatprep.subr.mxu0 0.0
    %124 = vmatpush1.msra.mxu0 %v85
    %125 = vmatprep.subr.mxu0 0.0
    %126 = vmatpush1.msra.mxu0 0.0
    %127 = vmatprep.subr.mxu0 0.0
    %128 = vmatpush1.msra.mxu0 0.0
    %129 = vmatprep.subr.mxu0 0.0
    %130 = vmatpush1.msra.mxu0 0.0
    %131 = vmatprep.subr.mxu0 0.0
    %132 = vmatpush1.msra.mxu0 0.0
    %133 = vmatprep.subr.mxu0 0.0
    %134 = vmatpush1.msra.mxu0 0.0
    %135 = vmatprep.subr.mxu0 0.0
    %136 = vmatpush1.msra.mxu0 0.0
    %137 = vmatprep.subr.mxu0 0.0
    %138 = vmatpush1.msra.mxu0 0.0
    %139 = vmatprep.subr.mxu0 0.0
    %140 = vmatpush1.msra.mxu0 0.0
    %141 = vmatprep.subr.mxu0 0.0
    %142 = vmatpush1.msra.mxu0 0.0
    %143 = vmatprep.subr.mxu0 0.0
    %144 = vmatpush1.msra.mxu0 0.0
    %145 = vmatprep.subr.mxu0 0.0
    %146 = vmatpush1.msra.mxu0 0.0
    %147 = vmatprep.subr.mxu0 0.0
    %148 = vmatpush1.msra.mxu0 0.0
    %149 = vmatprep.subr.mxu0 0.0
    %150 = vmatpush1.msra.mxu0 0.0
    %151 = vmatprep.subr.mxu0 0.0
    %152 = vmatpush1.msra.mxu0 0.0
    %153 = vmatprep.subr.mxu0 0.0
    %154 = vmatpush1.msra.mxu0 0.0
    %155 = vmatprep.subr.mxu0 0.0
    %156 = vmatpush1.msra.mxu0 0.0
    %157 = vmatprep.mubr.f32.mxu0 0.0
    %158 = vmatmul.mubr.f32.gmra.mrb[0].mxu0 %v54
    %v159 = vpop.f32.mrb[0].mxu0
    %v160 = vadd.f32 %v91, %v159
    %v161 = vpop.f32.mrb[0].mxu0
    %162 = vmatprep.mubr.f32.mxu0 0.0
    %163 = vmatmul.mubr.f32.gmra.mrb[0].mxu0 %v55
    %v164 = vpop.f32.mrb[0].mxu0
    %v165 = vadd.f32 %v91, %v164
    %v166 = vpop.f32.mrb[0].mxu0
    %167 = vmatprep.mubr.f32.mxu0 0.0
    %168 = vmatmul.mubr.f32.gmra.mrb[0].mxu0 %v56
    %v169 = vpop.f32.mrb[0].mxu0
    %v170 = vadd.f32 %v91, %v169
    %v171 = vpop.f32.mrb[0].mxu0
    %172 = vmatprep.mubr.f32.mxu0 0.0
    %173 = vmatmul.mubr.f32.gmra.mrb[0].mxu0 %v57
    %v174 = vpop.f32.mrb[0].mxu0
    %v175 = vadd.f32 %v91, %v174
    %v176 = vpop.f32.mrb[0].mxu0
    %177 = vmatprep.mubr.f32.mxu0 0.0
    %178 = vmatmul.mubr.f32.gmra.mrb[0].mxu0 %v58
    %v179 = vpop.f32.mrb[0].mxu0
    %v180 = vadd.f32 %v91, %v179
    %v181 = vpop.f32.mrb[0].mxu0
    %182 = vmatprep.mubr.f32.mxu0 0.0
    %183 = vmatmul.mubr.f32.gmra.mrb[0].mxu0 %v59
    %v184 = vpop.f32.mrb[0].mxu0
    %v185 = vadd.f32 %v91, %v184
    %v186 = vpop.f32.mrb[0].mxu0
    %187 = vmatprep.mubr.f32.mxu0 0.0
    %188 = vmatmul.mubr.f32.gmra.mrb[0].mxu0 %v60
    %v189 = vpop.f32.mrb[0].mxu0
    %v190 = vadd.f32 %v91, %v189
    %v191 = vpop.f32.mrb[0].mxu0
    %192 = vmatprep.mubr.f32.mxu0 0.0
    %193 = vmatmul.mubr.f32.gmra.mrb[0].mxu0 %v61
    %v194 = vpop.f32.mrb[0].mxu0
    %v195 = vadd.f32 %v91, %v194
    %v196 = vpop.f32.mrb[0].mxu0
    %197 = vmatprep.mubr.f32.mxu0 0.0
    %198 = vmatmul.mubr.f32.gmra.mrb[0].mxu0 %v62
    %v199 = vpop.f32.mrb[0].mxu0
    %v200 = vadd.f32 %v91, %v199
    %v201 = vpop.f32.mrb[0].mxu0
    %202 = vmatprep.mubr.f32.mxu0 0.0
    %203 = vmatmul.mubr.f32.gmra.mrb[0].mxu0 %v63
    %v204 = vpop.f32.mrb[0].mxu0
    %v205 = vadd.f32 %v91, %v204
    %v206 = vpop.f32.mrb[0].mxu0
    %207 = vmatprep.mubr.f32.mxu0 0.0
    %208 = vmatmul.mubr.f32.gmra.mrb[0].mxu0 %v64
    %v209 = vpop.f32.mrb[0].mxu0
    %v210 = vadd.f32 %v91, %v209
    %v211 = vpop.f32.mrb[0].mxu0
    %212 = vmatprep.mubr.f32.mxu0 0.0
    %213 = vmatmul.mubr.f32.gmra.mrb[0].mxu0 %v65
    %v214 = vpop.f32.mrb[0].mxu0
    %v215 = vadd.f32 %v91, %v214
    %v216 = vpop.f32.mrb[0].mxu0
    %217 = vmatprep.mubr.f32.mxu0 0.0
    %218 = vmatmul.mubr.f32.gmra.mrb[0].mxu0 %v66
    %v219 = vpop.f32.mrb[0].mxu0
    %v220 = vadd.f32 %v91, %v219
    %v221 = vpop.f32.mrb[0].mxu0
    %222 = vmatprep.mubr.f32.mxu0 0.0
    %223 = vmatmul.mubr.f32.gmra.mrb[0].mxu0 %v67
    %v224 = vpop.f32.mrb[0].mxu0
    %v225 = vadd.f32 %v91, %v224
    %v226 = vpop.f32.mrb[0].mxu0
    %227 = vmatprep.mubr.f32.mxu0 0.0
    %228 = vmatmul.mubr.f32.gmra.mrb[0].mxu0 %v68
    %v229 = vpop.f32.mrb[0].mxu0
    %v230 = vadd.f32 %v91, %v229
    %v231 = vpop.f32.mrb[0].mxu0
    %232 = vmatprep.mubr.f32.mxu0 0.0
    %233 = vmatmul.mubr.f32.gmra.mrb[0].mxu0 %v69
    %v234 = vpop.f32.mrb[0].mxu0
    %v235 = vadd.f32 %v91, %v234
    %v236 = vpop.f32.mrb[0].mxu0
    %237 = vdwg.mxu0
    %238 = vst [vmem:[#allocation8] sm:$0xff] %v160
    %239 = vst [vmem:[#allocation8 + $0x8] sm:$0xff] %v165
    %240 = vst [vmem:[#allocation8 + $0x10] sm:$0xff] %v170
    %241 = vst [vmem:[#allocation8 + $0x18] sm:$0xff] %v175
    %242 = vst [vmem:[#allocation8 + $0x20] sm:$0xff] %v180
    %243 = vst [vmem:[#allocation8 + $0x28] sm:$0xff] %v185
    %244 = vst [vmem:[#allocation8 + $0x30] sm:$0xff] %v190
    %245 = vst [vmem:[#allocation8 + $0x38] sm:$0xff] %v195
    %246 = vst [vmem:[#allocation8 + $0x40] sm:$0xff] %v200
    %247 = vst [vmem:[#allocation8 + $0x48] sm:$0xff] %v205
    %248 = vst [vmem:[#allocation8 + $0x50] sm:$0xff] %v210
    %249 = vst [vmem:[#allocation8 + $0x58] sm:$0xff] %v215
    %250 = vst [vmem:[#allocation8 + $0x60] sm:$0xff] %v220
    %251 = vst [vmem:[#allocation8 + $0x68] sm:$0xff] %v225
    %252 = vst [vmem:[#allocation8 + $0x70] sm:$0xff] %v230
    %253 = vst [vmem:[#allocation8 + $0x78] sm:$0xff] %v235
    // Predicated region
    $region26: #{tpu_custom_call.1} parent=1 // pred_check
      _
    $region27: #{tpu_custom_call.1} parent=1 // pred_check_branch
      %255 = sbr.rel (0) target = $region29
    $region28: #{tpu_custom_call.1} parent=1 // pred_region
      %s257 = ssub.s32 2048, 2048
      %258 = vsyncadd [#allocation4], %s257
      %s259 = sshll.u32 [#allocation8], 4
      %s260 = int_to_ptr.vmem [resolvable:$true] %s259
      %265 = dma.vmem_to_hbm [thread:$0]  %s260, 2048, %s3, [#allocation4], 128, 128, 8
    $region29: #{tpu_custom_call.1} parent=1 // pred_fallthru
      _
    // Predicated region
    $region30: #{tpu_custom_call.1} parent=1 // pred_check
      _
    $region31: #{tpu_custom_call.1} parent=1 // pred_check_branch
      %267 = sbr.rel (0) target = $region33
    $region32: #{tpu_custom_call.1} parent=1 // pred_region
      %268 = dma.done [#allocation4], 2048
    $region33: #{tpu_custom_call.1} parent=1 // pred_fallthru
      _
    %269 = vsyncpa [#allocation3], 1
    %270 = vsyncpa [#allocation6], 1
    %271 = vsyncpa [#allocation4], 1

</llo_original>
